<compile_context>
chip_gen: v7x
topology: tpu7x:2x2x1
jax: 0.10.0
libtpu: 0.0.40
codegen_flags: <defaults>
</compile_context>

<pallas_src>
import functools

import jax
import jax.numpy as jnp
from jax import lax
from jax.experimental import pallas as pl
from jax.experimental.pallas import tpu as pltpu

LANE = 128  # common lane-dense width all layer activations/weights are padded to


def _round_up(a, m):
    return ((a + m - 1) // m) * m


# --------------------------------------------------------------------------
# Kernel 1: phi network + masked sum-pool, grid = (B, n_point_tiles)
# --------------------------------------------------------------------------
def phi_pool_kernel(x_ref, w0_ref, w_ref, b_ref, out_ref, acc_ref, *,
                    n_valid, tile_n, point_dim, needs_mask):
    f32 = jnp.float32
    bf16 = jnp.bfloat16
    n = pl.program_id(1)
    last = pl.num_programs(1) - 1

    @pl.when(n == 0)
    def _init():
        acc_ref[...] = jnp.zeros_like(acc_ref)

    x = x_ref[0]                                  # (tile_n, point_dim) f32

    # ----- phi layer 0: K=point_dim -> done as VPU broadcast FMAs (no MXU pass)
    h = x[:, 0:1] * w0_ref[0:1, :]
    for c in range(1, point_dim):
        h = h + x[:, c:c + 1] * w0_ref[c:c + 1, :]
    h = jnp.maximum(h + b_ref[0:1, :], 0.0)       # (tile_n, LANE) f32

    # ----- phi layers 1..3: bf16 operands on the MXU, f32 accumulate/elementwise
    h = jnp.maximum(
        jnp.dot(h.astype(bf16), w_ref[0], preferred_element_type=f32) + b_ref[1:2, :], 0.0)
    h = jnp.maximum(
        jnp.dot(h.astype(bf16), w_ref[1], preferred_element_type=f32) + b_ref[2:3, :], 0.0)
    phi = jnp.dot(h.astype(bf16), w_ref[2], preferred_element_type=f32) + b_ref[3:4, :]

    # ----- pool: per-step (8, LANE) partial sums (vreg-wise adds, no XLU reduce)
    def _accumulate(vals):
        acc_ref[...] += jnp.sum(vals.reshape(tile_n // 8, 8, LANE), axis=0)

    if needs_mask:
        # Only the LAST tile can contain padded / out-of-range rows.
        @pl.when(n != last)
        def _acc_full():
            _accumulate(phi)

        @pl.when(n == last)
        def _acc_masked():
            row = lax.broadcasted_iota(jnp.int32, (tile_n, 1), 0)
            masked = jnp.where(n * tile_n + row < n_valid, phi, 0.0)
            _accumulate(masked)
    else:
        _accumulate(phi)

    # ----- finalize: single 8->1 cross-sublane reduce, once per set
    @pl.when(n == last)
    def _finalize():
        out_ref[0] = jnp.sum(acc_ref[...], axis=0, keepdims=True)


# --------------------------------------------------------------------------
# Kernel 2: rho network, batched over B (M = tile_b rows per MXU pass)
# --------------------------------------------------------------------------
def rho_kernel(g_ref, w_ref, b_ref, out_ref):
    f32 = jnp.float32
    bf16 = jnp.bfloat16
    g = g_ref[...]                                # (tile_b, LANE) f32
    for i in range(3):
        g = jnp.maximum(
            jnp.dot(g.astype(bf16), w_ref[i], preferred_element_type=f32) + b_ref[i:i + 1, :],
            0.0)
    out_ref[...] = (
        jnp.dot(g.astype(bf16), w_ref[3], preferred_element_type=f32) + b_ref[3:4, :])


# --------------------------------------------------------------------------
# Parameter construction / packing
# --------------------------------------------------------------------------
def _linear_init(key, fan_in, fan_out):
    """Deterministic PyTorch-default-style init: U(-1/sqrt(fan_in), +1/sqrt(fan_in))."""
    kw, kb = jax.random.split(key)
    bound = 1.0 / jnp.sqrt(jnp.float32(fan_in))
    w = jax.random.uniform(kw, (fan_in, fan_out), jnp.float32, -bound, bound)
    b = jax.random.uniform(kb, (1, fan_out), jnp.float32, -bound, bound)
    return w, b


def make_deepset_params(key, point_dim, hidden_dims, output_dim):
    """phi: point_dim -> ... -> hidden_dims[-1]; rho: hidden_dims[-1] -> ... -> output_dim."""
    def make_mlp(key, in_dim, hid, out_dim):
        keys = jax.random.split(key, len(hid) + 3)
        params = []
        cur = in_dim
        for i, h in enumerate(hid):                      # shared_net: Linear+ReLU(+Dropout)
            params.append(_linear_init(keys[i], cur, h))
            cur = h
        params.append(_linear_init(keys[len(hid) + 0], cur, cur))          # Linear(H, H)
        params.append(_linear_init(keys[len(hid) + 1], cur, cur // 2))     # Linear(H, H//2)
        params.append(_linear_init(keys[len(hid) + 2], cur // 2, out_dim)) # Linear(H//2, out)
        return params

    kphi, krho = jax.random.split(key)
    phi = make_mlp(kphi, point_dim, hidden_dims[:-1], hidden_dims[-1])
    rho = make_mlp(krho, hidden_dims[-1], hidden_dims[:-1], output_dim)
    return phi, rho


def pack_params(phi_params, rho_params, point_dim):
    """Pack the 8 Linear layers into lane-dense, zero-padded slabs.

    Weights (except the tiny first phi layer, which stays f32 for the VPU FMA
    path) are stored in bf16; biases stay f32.
    """
    assert len(phi_params) == 4 and len(rho_params) == 4

    def pad_w(w):
        return jnp.zeros((LANE, LANE), jnp.float32).at[:w.shape[0], :w.shape[1]].set(w)

    def pad_b(b):
        return jnp.zeros((LANE,), jnp.float32).at[:b.shape[1]].set(b[0])

    w0 = phi_params[0][0]
    w0_pad = jnp.zeros((point_dim, LANE), jnp.float32).at[:, :w0.shape[1]].set(w0)

    w_phi = jnp.stack([pad_w(w) for (w, _) in phi_params[1:]]).astype(jnp.bfloat16)  # (3,128,128)
    b_phi = jnp.stack([pad_b(b) for (_, b) in phi_params])                            # (4,128) f32
    w_rho = jnp.stack([pad_w(w) for (w, _) in rho_params]).astype(jnp.bfloat16)       # (4,128,128)
    b_rho = jnp.stack([pad_b(b) for (_, b) in rho_params])                            # (4,128) f32
    return w0_pad, w_phi, b_phi, w_rho, b_rho


# --------------------------------------------------------------------------
# Forward wrapper
# --------------------------------------------------------------------------
def deepset_forward(x, phi_params, rho_params, point_dim=3,
                    max_tile_n=2048, max_tile_b=1024):
    """x: (B, N*point_dim) float32 -> (B, output_dim)."""
    B = x.shape[0]
    pts = x.reshape(B, -1, point_dim)                            # (B, N, point_dim)
    N = pts.shape[1]
    out_dim = rho_params[-1][0].shape[1]

    # Point-axis tile: multiple of 8 sublanes, up to 2048 rows per step.
    tile_n = min(max_tile_n, _round_up(N, 8))
    n_tiles = pl.cdiv(N, tile_n)
    needs_mask = (n_tiles * tile_n != N)
    if tile_n > N:
        # Tiny (<8 row) pad so a block is never larger than the array; the big
        # multi-tile case relies on Pallas edge blocks + the in-kernel mask.
        pts = jnp.pad(pts, ((0, 0), (0, tile_n - N), (0, 0)))

    w0, w_phi, b_phi, w_rho, b_rho = pack_params(phi_params, rho_params, point_dim)

    phi_kernel = functools.partial(
        phi_pool_kernel, n_valid=N, tile_n=tile_n, point_dim=point_dim,
        needs_mask=needs_mask)

    pooled = pl.pallas_call(
        phi_kernel,
        out_shape=jax.ShapeDtypeStruct((B, 1, LANE), jnp.float32),
        grid_spec=pltpu.PrefetchScalarGridSpec(
            num_scalar_prefetch=0,
            grid=(B, n_tiles),
            in_specs=[
                pl.BlockSpec((1, tile_n, point_dim), lambda b, n: (b, n, 0)),
                pl.BlockSpec((point_dim, LANE), lambda b, n: (0, 0)),
                pl.BlockSpec((3, LANE, LANE), lambda b, n: (0, 0, 0)),
                pl.BlockSpec((4, LANE), lambda b, n: (0, 0)),
            ],
            out_specs=pl.BlockSpec((1, 1, LANE), lambda b, n: (b, 0, 0)),
            scratch_shapes=[pltpu.VMEM((8, LANE), jnp.float32)],
        ),
        compiler_params=pltpu.CompilerParams(
            dimension_semantics=("parallel", "arbitrary")),
    )(pts, w0, w_phi, b_phi)

    pooled = pooled.reshape(B, LANE)

    # rho: batched over B so every matmul has M = tile_b rows (no M=1 drains).
    tile_b = min(max_tile_b, _round_up(B, 8))
    b_pad = _round_up(B, tile_b)
    if b_pad != B:
        pooled = jnp.pad(pooled, ((0, b_pad - B), (0, 0)))      # tiny (B,128) pad

    out = pl.pallas_call(
        rho_kernel,
        out_shape=jax.ShapeDtypeStruct((b_pad, LANE), jnp.float32),
        grid_spec=pltpu.PrefetchScalarGridSpec(
            num_scalar_prefetch=0,
            grid=(b_pad // tile_b,),
            in_specs=[
                pl.BlockSpec((tile_b, LANE), lambda i: (i, 0)),
                pl.BlockSpec((4, LANE, LANE), lambda i: (0, 0, 0)),
                pl.BlockSpec((4, LANE), lambda i: (0, 0)),
            ],
            out_specs=pl.BlockSpec((tile_b, LANE), lambda i: (i, 0)),
        ),
        compiler_params=pltpu.CompilerParams(
            dimension_semantics=("parallel",)),
    )(pooled, w_rho, b_rho)

    return out[:B, :out_dim]


# --------------------------------------------------------------------------
# Pure-JAX reference
# --------------------------------------------------------------------------
def deepset_reference(x, phi_params, rho_params, point_dim=3, bf16_weights=False):
    """f32 reference; with bf16_weights=True, weights (except phi layer 0) are
    rounded to bf16 to mirror the kernel's packed-slab precision."""
    B = x.shape[0]
    pts = x.reshape(B, -1, point_dim)

    def q(w):
        return w.astype(jnp.bfloat16).astype(jnp.float32) if bf16_weights else w

    def mlp(h, params, keep_first_f32):
        for i, (w, b) in enumerate(params):
            wq = w if (keep_first_f32 and i == 0) else q(w)
            h = h @ wq + b
            if i < len(params) - 1:
                h = jnp.maximum(h, 0.0)
        return h

    phi = mlp(pts, phi_params, keep_first_f32=True)     # (B, N, H_last)
    summed = jnp.sum(phi, axis=1)                        # (B, H_last)
    return mlp(summed, rho_params, keep_first_f32=False)


if __name__ == "__main__":
    point_dim = 3
    hidden_dims = [32, 16]
    output_dim = 4
    B = 2

    key = jax.random.PRNGKey(0)
    kx, kp = jax.random.split(key)
    phi_params, rho_params = make_deepset_params(kp, point_dim, hidden_dims, output_dim)

    # Test 1: N=8 -> single tile, no masking path.
    N = 8
    x = jax.random.normal(kx, (B, N * point_dim), dtype=jnp.float32)        # (2, 24)
    out = jax.block_until_ready(deepset_forward(x, phi_params, rho_params, point_dim))
    ref = deepset_reference(x, phi_params, rho_params, point_dim, bf16_weights=True)
    assert out.shape == (B, output_dim)
    assert jnp.allclose(out, ref, atol=3e-2, rtol=3e-2), (out, ref)

    # Test 2: ragged N with a forced tiny tile -> multi-tile reduction + edge
    # block + last-tile-only masking (no host-side pad of the input).
    N2 = 20
    x2 = jax.random.normal(jax.random.PRNGKey(1), (B, N2 * point_dim), dtype=jnp.float32)
    out2 = jax.block_until_ready(
        deepset_forward(x2, phi_params, rho_params, point_dim, max_tile_n=8))
    ref2 = deepset_reference(x2, phi_params, rho_params, point_dim, bf16_weights=True)
    assert jnp.allclose(out2, ref2, atol=3e-2, rtol=3e-2), (out2, ref2)

    # Test 3: N not a multiple of 8 with the default tile -> tiny tail pad + mask.
    N3 = 10
    x3 = jax.random.normal(jax.random.PRNGKey(2), (B, N3 * point_dim), dtype=jnp.float32)
    out3 = jax.block_until_ready(deepset_forward(x3, phi_params, rho_params, point_dim))
    ref3 = deepset_reference(x3, phi_params, rho_params, point_dim, bf16_weights=True)
    assert jnp.allclose(out3, ref3, atol=3e-2, rtol=3e-2), (out3, ref3)

    print("KERNEL_OK")
</pallas_src>

<mosaic_0001>
module attributes {stable_mosaic.version = 11 : i64} {
  func.func @phi_pool_kernel(%arg0: i32, %arg1: i32, %arg2: memref<1x8x3xf32, #tpu.memory_space<vmem>>, %arg3: memref<3x128xf32, #tpu.memory_space<vmem>>, %arg4: memref<3x128x128xbf16, #tpu.memory_space<vmem>>, %arg5: memref<4x128xf32, #tpu.memory_space<vmem>>, %arg6: memref<1x1x128xf32, #tpu.memory_space<vmem>>, %arg7: memref<8x128xf32, #tpu.memory_space<vmem>>) attributes {dimension_semantics = [#tpu.dimension_semantics<parallel>, #tpu.dimension_semantics<arbitrary>], iteration_bounds = array<i64: 2, 1>, scalar_prefetch = 0 : i64, scratch_operands = 1 : i64, tpu.core_type = #tpu.core_type<tc>, window_params = [{transform_indices = @transform_0, window_bounds = array<i64: 1, 8, 3>}, {pipeline_mode = #tpu.pipeline_mode<synchronous>, transform_indices = @transform_1, window_bounds = array<i64: 3, 128>}, {pipeline_mode = #tpu.pipeline_mode<synchronous>, transform_indices = @transform_2, window_bounds = array<i64: 3, 128, 128>}, {pipeline_mode = #tpu.pipeline_mode<synchronous>, transform_indices = @transform_3, window_bounds = array<i64: 4, 128>}, {transform_indices = @transform_4, window_bounds = array<i64: 1, 1, 128>}]} {
    %c0_i32 = arith.constant 0 : i32
    %0 = arith.cmpi eq, %arg1, %c0_i32 : i32
    %1 = arith.extui %0 : i1 to i32
    %c0_i32_0 = arith.constant 0 : i32
    %2 = arith.cmpi ne, %1, %c0_i32_0 : i32
    scf.if %2 {
      %cst_35 = arith.constant 0.000000e+00 : f32
      %60 = vector.broadcast %cst_35 : f32 to vector<8x128xf32>
      %c0_36 = arith.constant 0 : index
      %c0_37 = arith.constant 0 : index
      %61 = vector.load %arg7[%c0_36, %c0_37] : memref<8x128xf32, #tpu.memory_space<vmem>>, vector<8x128xf32>
      tpu.vector_store %arg7[%c0_36, %c0_37], %60 {strides = array<i32>} : memref<8x128xf32, #tpu.memory_space<vmem>>, vector<8x128xf32>,
    } else {
    }
    %c0 = arith.constant 0 : index
    %c0_1 = arith.constant 0 : index
    %c0_2 = arith.constant 0 : index
    %3 = vector.load %arg2[%c0, %c0_1, %c0_2] : memref<1x8x3xf32, #tpu.memory_space<vmem>>, vector<1x8x3xf32>
    %4 = vector.shape_cast %3 : vector<1x8x3xf32> to vector<8x3xf32>
    %5 = vector.extract_strided_slice %4 {offsets = [0, 0], sizes = [8, 1], strides = [1, 1]} : vector<8x3xf32> to vector<8x1xf32>
    %c0_3 = arith.constant 0 : index
    %c0_4 = arith.constant 0 : index
    %6 = vector.load %arg3[%c0_3, %c0_4] : memref<3x128xf32, #tpu.memory_space<vmem>>, vector<1x128xf32>
    %7 = vector.broadcast %5 : vector<8x1xf32> to vector<8x128xf32>
    %8 = vector.broadcast %6 : vector<1x128xf32> to vector<8x128xf32>
    %9 = arith.mulf %7, %8 : vector<8x128xf32>
    %10 = vector.extract_strided_slice %4 {offsets = [0, 1], sizes = [8, 1], strides = [1, 1]} : vector<8x3xf32> to vector<8x1xf32>
    %c1 = arith.constant 1 : index
    %c0_5 = arith.constant 0 : index
    %11 = vector.load %arg3[%c1, %c0_5] : memref<3x128xf32, #tpu.memory_space<vmem>>, vector<1x128xf32>
    %12 = vector.broadcast %10 : vector<8x1xf32> to vector<8x128xf32>
    %13 = vector.broadcast %11 : vector<1x128xf32> to vector<8x128xf32>
    %14 = arith.mulf %12, %13 : vector<8x128xf32>
    %15 = arith.addf %9, %14 : vector<8x128xf32>
    %16 = vector.extract_strided_slice %4 {offsets = [0, 2], sizes = [8, 1], strides = [1, 1]} : vector<8x3xf32> to vector<8x1xf32>
    %c2 = arith.constant 2 : index
    %c0_6 = arith.constant 0 : index
    %17 = vector.load %arg3[%c2, %c0_6] : memref<3x128xf32, #tpu.memory_space<vmem>>, vector<1x128xf32>
    %18 = vector.broadcast %16 : vector<8x1xf32> to vector<8x128xf32>
    %19 = vector.broadcast %17 : vector<1x128xf32> to vector<8x128xf32>
    %20 = arith.mulf %18, %19 : vector<8x128xf32>
    %21 = arith.addf %15, %20 : vector<8x128xf32>
    %c0_7 = arith.constant 0 : index
    %c0_8 = arith.constant 0 : index
    %22 = vector.load %arg5[%c0_7, %c0_8] : memref<4x128xf32, #tpu.memory_space<vmem>>, vector<1x128xf32>
    %23 = vector.broadcast %22 : vector<1x128xf32> to vector<8x128xf32>
    %24 = arith.addf %21, %23 : vector<8x128xf32>
    %cst = arith.constant 0.000000e+00 : f32
    %25 = vector.broadcast %cst : f32 to vector<8x128xf32>
    %26 = arith.maximumf %24, %25 : vector<8x128xf32>
    %27 = arith.truncf %26 : vector<8x128xf32> to vector<8x128xbf16>
    %c0_9 = arith.constant 0 : index
    %c0_10 = arith.constant 0 : index
    %c0_11 = arith.constant 0 : index
    %28 = vector.load %arg4[%c0_9, %c0_10, %c0_11] : memref<3x128x128xbf16, #tpu.memory_space<vmem>>, vector<1x128x128xbf16>
    %29 = vector.shape_cast %28 : vector<1x128x128xbf16> to vector<128x128xbf16>
    %cst_12 = arith.constant dense<0.000000e+00> : vector<8x128xf32>
    %30 = tpu.matmul %27, %29, %cst_12 {dimension_numbers = #tpu.dot_dimension_numbers<[1], [0], [0], [1], [0, 0, 1, 1], [], []>} : vector<8x128xbf16>, vector<128x128xbf16>, vector<8x128xf32> -> vector<8x128xf32>
    %c1_13 = arith.constant 1 : index
    %c0_14 = arith.constant 0 : index
    %31 = vector.load %arg5[%c1_13, %c0_14] : memref<4x128xf32, #tpu.memory_space<vmem>>, vector<1x128xf32>
    %32 = vector.broadcast %31 : vector<1x128xf32> to vector<8x128xf32>
    %33 = arith.addf %30, %32 : vector<8x128xf32>
    %cst_15 = arith.constant 0.000000e+00 : f32
    %34 = vector.broadcast %cst_15 : f32 to vector<8x128xf32>
    %35 = arith.maximumf %33, %34 : vector<8x128xf32>
    %36 = arith.truncf %35 : vector<8x128xf32> to vector<8x128xbf16>
    %c1_16 = arith.constant 1 : index
    %c0_17 = arith.constant 0 : index
    %c0_18 = arith.constant 0 : index
    %37 = vector.load %arg4[%c1_16, %c0_17, %c0_18] : memref<3x128x128xbf16, #tpu.memory_space<vmem>>, vector<1x128x128xbf16>
    %38 = vector.shape_cast %37 : vector<1x128x128xbf16> to vector<128x128xbf16>
    %cst_19 = arith.constant dense<0.000000e+00> : vector<8x128xf32>
    %39 = tpu.matmul %36, %38, %cst_19 {dimension_numbers = #tpu.dot_dimension_numbers<[1], [0], [0], [1], [0, 0, 1, 1], [], []>} : vector<8x128xbf16>, vector<128x128xbf16>, vector<8x128xf32> -> vector<8x128xf32>
    %c2_20 = arith.constant 2 : index
    %c0_21 = arith.constant 0 : index
    %40 = vector.load %arg5[%c2_20, %c0_21] : memref<4x128xf32, #tpu.memory_space<vmem>>, vector<1x128xf32>
    %41 = vector.broadcast %40 : vector<1x128xf32> to vector<8x128xf32>
    %42 = arith.addf %39, %41 : vector<8x128xf32>
    %cst_22 = arith.constant 0.000000e+00 : f32
    %43 = vector.broadcast %cst_22 : f32 to vector<8x128xf32>
    %44 = arith.maximumf %42, %43 : vector<8x128xf32>
    %45 = arith.truncf %44 : vector<8x128xf32> to vector<8x128xbf16>
    %c2_23 = arith.constant 2 : index
    %c0_24 = arith.constant 0 : index
    %c0_25 = arith.constant 0 : index
    %46 = vector.load %arg4[%c2_23, %c0_24, %c0_25] : memref<3x128x128xbf16, #tpu.memory_space<vmem>>, vector<1x128x128xbf16>
    %47 = vector.shape_cast %46 : vector<1x128x128xbf16> to vector<128x128xbf16>
    %cst_26 = arith.constant dense<0.000000e+00> : vector<8x128xf32>
    %48 = tpu.matmul %45, %47, %cst_26 {dimension_numbers = #tpu.dot_dimension_numbers<[1], [0], [0], [1], [0, 0, 1, 1], [], []>} : vector<8x128xbf16>, vector<128x128xbf16>, vector<8x128xf32> -> vector<8x128xf32>
    %c3 = arith.constant 3 : index
    %c0_27 = arith.constant 0 : index
    %49 = vector.load %arg5[%c3, %c0_27] : memref<4x128xf32, #tpu.memory_space<vmem>>, vector<1x128xf32>
    %50 = vector.broadcast %49 : vector<1x128xf32> to vector<8x128xf32>
    %51 = arith.addf %48, %50 : vector<8x128xf32>
    %c0_28 = arith.constant 0 : index
    %c0_29 = arith.constant 0 : index
    %52 = vector.load %arg7[%c0_28, %c0_29] : memref<8x128xf32, #tpu.memory_space<vmem>>, vector<8x128xf32>
    %53 = vector.shape_cast %51 : vector<8x128xf32> to vector<1x8x128xf32>
    %cst_30 = arith.constant dense<0.000000e+00> : vector<8x128xf32>
    %54 = vector.multi_reduction <add>, %53, %cst_30 [0] : vector<1x8x128xf32> to vector<8x128xf32>
    %55 = arith.addf %52, %54 : vector<8x128xf32>
    %c0_31 = arith.constant 0 : index
    %c0_32 = arith.constant 0 : index
    %56 = vector.load %arg7[%c0_31, %c0_32] : memref<8x128xf32, #tpu.memory_space<vmem>>, vector<8x128xf32>
    tpu.vector_store %arg7[%c0_31, %c0_32], %55 {strides = array<i32>} : memref<8x128xf32, #tpu.memory_space<vmem>>, vector<8x128xf32>,
    %c0_i32_33 = arith.constant 0 : i32
    %57 = arith.cmpi eq, %arg1, %c0_i32_33 : i32
    %58 = arith.extui %57 : i1 to i32
    %c0_i32_34 = arith.constant 0 : i32
    %59 = arith.cmpi ne, %58, %c0_i32_34 : i32
    scf.if %59 {
      %c0_35 = arith.constant 0 : index
      %c0_36 = arith.constant 0 : index
      %60 = vector.load %arg7[%c0_35, %c0_36] : memref<8x128xf32, #tpu.memory_space<vmem>>, vector<8x128xf32>
      %cst_37 = arith.constant dense<0.000000e+00> : vector<128xf32>
      %61 = vector.multi_reduction <add>, %60, %cst_37 [0] : vector<8x128xf32> to vector<128xf32>
      %62 = vector.shape_cast %61 : vector<128xf32> to vector<1x128xf32>
      %c0_38 = arith.constant 0 : index
      %c0_39 = arith.constant 0 : index
      %c0_40 = arith.constant 0 : index
      %63 = vector.load %arg6[%c0_38, %c0_39, %c0_40] : memref<1x1x128xf32, #tpu.memory_space<vmem>>, vector<1x1x128xf32>
      %64 = vector.shape_cast %63 : vector<1x1x128xf32> to vector<1x128xf32>
      %65 = vector.shape_cast %62 : vector<1x128xf32> to vector<1x1x128xf32>
      tpu.vector_store %arg6[%c0_38, %c0_39, %c0_40], %65 {strides = array<i32>} : memref<1x1x128xf32, #tpu.memory_space<vmem>>, vector<1x1x128xf32>,
    } else {
    }
    return
  }
  func.func @transform_0(%arg0: i32, %arg1: i32) -> (i32, i32, i32) {
    %c0_i32 = arith.constant 0 : i32
    %c0_i32_0 = arith.constant 0 : i32
    return %arg0, %arg1, %c0_i32 : i32, i32, i32
  }
  func.func @transform_1(%arg0: i32, %arg1: i32) -> (i32, i32) {
    %c0_i32 = arith.constant 0 : i32
    %c0_i32_0 = arith.constant 0 : i32
    %c0_i32_1 = arith.constant 0 : i32
    return %c0_i32, %c0_i32_0 : i32, i32
  }
  func.func @transform_2(%arg0: i32, %arg1: i32) -> (i32, i32, i32) {
    %c0_i32 = arith.constant 0 : i32
    %c0_i32_0 = arith.constant 0 : i32
    %c0_i32_1 = arith.constant 0 : i32
    %c0_i32_2 = arith.constant 0 : i32
    return %c0_i32, %c0_i32_0, %c0_i32_1 : i32, i32, i32
  }
  func.func @transform_3(%arg0: i32, %arg1: i32) -> (i32, i32) {
    %c0_i32 = arith.constant 0 : i32
    %c0_i32_0 = arith.constant 0 : i32
    %c0_i32_1 = arith.constant 0 : i32
    return %c0_i32, %c0_i32_0 : i32, i32
  }
  func.func @transform_4(%arg0: i32, %arg1: i32) -> (i32, i32, i32) {
    %c0_i32 = arith.constant 0 : i32
    %c0_i32_0 = arith.constant 0 : i32
    %c0_i32_1 = arith.constant 0 : i32
    return %arg0, %c0_i32, %c0_i32_0 : i32, i32, i32
  }
}

</mosaic_0001>

<llo_original>
// kernel: tpu_custom_call.1
$region0: #{tpu_custom_call.1}
  #allocation0 [shape = 'u32[]', space=smem, size = 0x4, offset = 0x4, fixed_abs, tag = 'smem constant byte address 0x4 - core index']
  #allocation1 [shape = 'u32[144,128]{1,0:T(1,128)}', space=vmem, size = 0x12000, scoped, tag = 'internal scratch']
  #allocation2 [shape = 'f32[8,128]{1,0:T(8,128)}', space=vmem, size = 0x1000, scoped, tag = 'scratch operand']
  %s0 = inlined_call_operand.vmem [shape: f32[2,8,3], index: 0, kind: input, shape index: {}]
  %s1 = inlined_call_operand.vmem [shape: f32[3,128], index: 1, kind: input, shape index: {}]
  %s2 = inlined_call_operand.hbm [shape: bf16[3,128,128], index: 2, kind: input, shape index: {}]
  %s3 = inlined_call_operand.vmem [shape: f32[4,128], index: 3, kind: input, shape index: {}]
  %s4 = inlined_call_operand.hbm [shape: f32[2,1,128], index: 4, kind: output, shape index: {}]
  %s5 = sld [smem:[#allocation0]]
  $region61: #{tpu_custom_call.1} parent=0
    _
  %s7 = ssub.s32 1, %s5
  %s8 = scalar_select 0, %s7, %s5
  $region1: #{tpu_custom_call.1} parent=0
    #allocation3 [shape = 'u8[98304]{0}', space=vmem, size = 0x18000, scoped, tag = 'input window, operand 2, single buffered']
    #allocation4 [shape = 's32[2]{0}', space=sflag, size = 0x8, scoped, tag = 'scoped memory for tpu_custom_call.1']
    #allocation5 [shape = 's32[2]{0}', space=sflag, size = 0x8, scoped, tag = 'scoped memory for tpu_custom_call.1']
    #allocation6 [shape = 'u8[1024]{0}', space=vmem, size = 0x400, scoped, tag = 'output window, operand 0']
    %9 = vsyncpa [#allocation4], 0
    %10 = vsyncpa [#allocation5], 0
    %s11 = scalar_lea.sflag [#allocation5], 1
    %12 = vsyncpa %s11, 0
    loop: start=0, step=1, limit=4
    $region2: #{tpu_custom_call.1} parent=1 // loop_pre_header
      _
    $region3: #{tpu_custom_call.1} parent=1 // loop_header
      %s14 = sphi 0, %s18
      %p15 = scmp.ge.s32.totalorder %s14, 4
      %s21 = sphi 0, %s33
      %s22 = sphi 0, %s29
      %s23 = sphi 0, %s21
      %s24 = sphi 0, %s22
      %s25 = sphi 0, %s23
      %s26 = sphi 0, %s24
      %s38 = sphi 0, %s40
      %s41 = sphi 0, %s38
      %s42 = sphi 0, %s41
      %s58 = sphi 0, %s42
      %s62 = sphi 0, %s62
      %s64 = sphi 0, %s62
      %s65 = sphi 0, %s64
      %s79 = sphi 0, %s65
      %s83 = sphi 0, %s83
      %s85 = sphi 0, %s83
      %s86 = sphi 0, %s85
      %s100 = sphi 0, %s86
      %s104 = sphi 0, %s104
      %s106 = sphi 0, %s104
      %s107 = sphi 0, %s106
      %s121 = sphi 0, %s107
      %s127 = sphi 0, %s129
      %s130 = sphi 0, %s127
      %s131 = sphi 0, %s130
      %s147 = sphi 0, %s131
    $region4: #{tpu_custom_call.1} parent=1 // loop_header_branch
      %17 = sbr.rel (%p15) target = $region8
    $region5: #{tpu_custom_call.1} parent=1 // loop_body
      %s19 = ssub.s32 %s14, 1
      %s20 = ssub.s32 %s14, 2
      %s27 = sadd.s32 1, %s22
      %p28 = scmp.ge.s32.totalorder %s27, 1
      %s29 = scalar_select %p28, 0, %s27
      %s30 = sadd.s32 1, %s21
      %s31 = scalar_select %p28, %s30, %s21
      %p32 = scmp.ge.s32.totalorder %s31, 2
      %s33 = scalar_select %p32, 0, %s31
      %s34 = ssub.s32 %s21, %s33
      %s35 = ssub.s32 %s22, %s29
      %s36 = sor.u32 %s34, %s35
      %p37 = scmp.eq.s32.totalorder %s36, 0
      %s39 = sadd.s32 %s38, 1
      %s40 = scalar_select %p37, %s38, %s39
      %p43 = pneg %p37
      %p44 = scmp.eq.s32.totalorder %s14, 1
      %p45 = por %p43, %p44
      %p46 = scmp.ne.s32.totalorder %s38, %s41
      %p47 = scmp.eq.s32.totalorder %s14, 0
      %p48 = por %p46, %p47
      %p49 = scmp.ne.s32.totalorder %s38, %s41
      %p50 = scmp.eq.s32.totalorder %s19, 1
      %p51 = por %p49, %p50
      %p52 = scmp.ne.s32.totalorder %s41, %s42
      %p53 = scmp.eq.s32.totalorder %s19, 0
      %p54 = por %p52, %p53
      %p55 = scmp.ne.s32.totalorder %s41, %s42
      %p56 = scmp.eq.s32.totalorder %s20, 1
      %p57 = por %p55, %p56
      %p59 = scmp.ne.s32.totalorder %s42, %s58
      %p60 = scmp.eq.s32.totalorder %s20, 0
      %p61 = por %p59, %p60
      %s63 = sadd.s32 %s62, 1
      %p66 = scmp.eq.s32.totalorder %s14, 1
      %p67 = scmp.ne.s32.totalorder %s62, %s64
      %p68 = scmp.eq.s32.totalorder %s14, 0
      %p69 = por %p67, %p68
      %p70 = scmp.ne.s32.totalorder %s62, %s64
      %p71 = scmp.eq.s32.totalorder %s19, 1
      %p72 = por %p70, %p71
      %p73 = scmp.ne.s32.totalorder %s64, %s65
      %p74 = scmp.eq.s32.totalorder %s19, 0
      %p75 = por %p73, %p74
      %p76 = scmp.ne.s32.totalorder %s64, %s65
      %p77 = scmp.eq.s32.totalorder %s20, 1
      %p78 = por %p76, %p77
      %p80 = scmp.ne.s32.totalorder %s65, %s79
      %p81 = scmp.eq.s32.totalorder %s20, 0
      %p82 = por %p80, %p81
      %s84 = sadd.s32 %s83, 1
      %p87 = scmp.eq.s32.totalorder %s14, 1
      %p88 = scmp.ne.s32.totalorder %s83, %s85
      %p89 = scmp.eq.s32.totalorder %s14, 0
      %p90 = por %p88, %p89
      %p91 = scmp.ne.s32.totalorder %s83, %s85
      %p92 = scmp.eq.s32.totalorder %s19, 1
      %p93 = por %p91, %p92
      %p94 = scmp.ne.s32.totalorder %s85, %s86
      %p95 = scmp.eq.s32.totalorder %s19, 0
      %p96 = por %p94, %p95
      %p97 = scmp.ne.s32.totalorder %s85, %s86
      %p98 = scmp.eq.s32.totalorder %s20, 1
      %p99 = por %p97, %p98
      %p101 = scmp.ne.s32.totalorder %s86, %s100
      %p102 = scmp.eq.s32.totalorder %s20, 0
      %p103 = por %p101, %p102
      %s105 = sadd.s32 %s104, 1
      %p108 = scmp.eq.s32.totalorder %s14, 1
      %p109 = scmp.ne.s32.totalorder %s104, %s106
      %p110 = scmp.eq.s32.totalorder %s14, 0
      %p111 = por %p109, %p110
      %p112 = scmp.ne.s32.totalorder %s104, %s106
      %p113 = scmp.eq.s32.totalorder %s19, 1
      %p114 = por %p112, %p113
      %p115 = scmp.ne.s32.totalorder %s106, %s107
      %p116 = scmp.eq.s32.totalorder %s19, 0
      %p117 = por %p115, %p116
      %p118 = scmp.ne.s32.totalorder %s106, %s107
      %p119 = scmp.eq.s32.totalorder %s20, 1
      %p120 = por %p118, %p119
      %p122 = scmp.ne.s32.totalorder %s107, %s121
      %p123 = scmp.eq.s32.totalorder %s20, 0
      %p124 = por %p122, %p123
      %s125 = ssub.s32 %s21, %s33
      %p126 = scmp.eq.s32.totalorder %s125, 0
      %s128 = sadd.s32 %s127, 1
      %s129 = scalar_select %p126, %s127, %s128
      %p132 = pneg %p126
      %p133 = scmp.eq.s32.totalorder %s14, 1
      %p134 = por %p132, %p133
      %p135 = scmp.ne.s32.totalorder %s127, %s130
      %p136 = scmp.eq.s32.totalorder %s14, 0
      %p137 = por %p135, %p136
      %p138 = scmp.ne.s32.totalorder %s127, %s130
      %p139 = scmp.eq.s32.totalorder %s19, 1
      %p140 = por %p138, %p139
      %p141 = scmp.ne.s32.totalorder %s130, %s131
      %p142 = scmp.eq.s32.totalorder %s19, 0
      %p143 = por %p141, %p142
      %p144 = scmp.ne.s32.totalorder %s130, %s131
      %p145 = scmp.eq.s32.totalorder %s20, 1
      %p146 = por %p144, %p145
      %p148 = scmp.ne.s32.totalorder %s131, %s147
      %p149 = scmp.eq.s32.totalorder %s20, 0
      %p150 = por %p148, %p149
      %p151 = scmp.le.s32.totalorder 1, %s14
      %p152 = scmp.lt.s32.totalorder %s14, 3
      %p153 = pnand %p151, %p152
      %p154 = pneg %p153
      // Predicated region
      $region9: #{tpu_custom_call.1} parent=5 // pred_check
        _
      $region10: #{tpu_custom_call.1} parent=5 // pred_check_branch
        %156 = sbr.rel (%p153) target = $region12
      $region11: #{tpu_custom_call.1} parent=5 // pred_region
        %s157 = ssub.s32 %s14, 1
        // Predicated region
        $region13: #{tpu_custom_call.1} parent=11 // pred_check
          %p158 = pneg %p75
        $region14: #{tpu_custom_call.1} parent=11 // pred_check_branch
          %160 = sbr.rel (%p158) target = $region16
        $region15: #{tpu_custom_call.1} parent=11 // pred_region
          _
        $region16: #{tpu_custom_call.1} parent=11 // pred_fallthru
          _
        // Predicated region
        $region17: #{tpu_custom_call.1} parent=11 // pred_check
          %p161 = pneg %p96
        $region18: #{tpu_custom_call.1} parent=11 // pred_check_branch
          %163 = sbr.rel (%p161) target = $region20
        $region19: #{tpu_custom_call.1} parent=11 // pred_region
          %s165 = ssub.s32 3072, 3072
          %166 = vsyncadd [#allocation4], %s165
          %s167 = sshll.u32 [#allocation3], 4
          %s168 = int_to_ptr.vmem [resolvable:$true] %s167
          %173 = dma.hbm_to_vmem [thread:$0]  %s2, 3072, %s168, [#allocation4], 64, 64, 4
        $region20: #{tpu_custom_call.1} parent=11 // pred_fallthru
          _
        // Predicated region
        $region21: #{tpu_custom_call.1} parent=11 // pred_check
          %p174 = pneg %p117
        $region22: #{tpu_custom_call.1} parent=11 // pred_check_branch
          %176 = sbr.rel (%p174) target = $region24
        $region23: #{tpu_custom_call.1} parent=11 // pred_region
          _
        $region24: #{tpu_custom_call.1} parent=11 // pred_fallthru
          _
      $region12: #{tpu_custom_call.1} parent=5 // pred_fallthru
        _
      %p177 = scmp.lt.s32.totalorder %s14, 2
      // Predicated region
      $region25: #{tpu_custom_call.1} parent=5 // pred_check
        %p178 = pneg %p177
      $region26: #{tpu_custom_call.1} parent=5 // pred_check_branch
        %180 = sbr.rel (%p178) target = $region28
      $region27: #{tpu_custom_call.1} parent=5 // pred_region
        // Predicated region
        $region29: #{tpu_custom_call.1} parent=27 // pred_check
          %p181 = pneg %p48
        $region30: #{tpu_custom_call.1} parent=27 // pred_check_branch
          %183 = sbr.rel (%p181) target = $region32
        $region31: #{tpu_custom_call.1} parent=27 // pred_region
          %p184 = scmp.lt.s32.totalorder %s21, 1
          %s185 = scalar_select %p184, %s21, 1
          %p186 = scmp.lt.s32.totalorder %s22, 0
          %s187 = scalar_select %p186, %s22, 0
          %s188 = sadd.s32 %s187, %s185
          %s189 = smul.addr %s188, 8
          %s190 = scalar_lea.vmem %s0, %s189
        $region32: #{tpu_custom_call.1} parent=27 // pred_fallthru
          _
      $region28: #{tpu_custom_call.1} parent=5 // pred_fallthru
        _
      %p191 = scmp.le.s32.totalorder 1, %s14
      %p192 = scmp.lt.s32.totalorder %s14, 3
      %p193 = pnand %p191, %p192
      %p194 = pneg %p193
      // Predicated region
      $region33: #{tpu_custom_call.1} parent=5 // pred_check
        _
      $region34: #{tpu_custom_call.1} parent=5 // pred_check_branch
        %196 = sbr.rel (%p193) target = $region36
      $region35: #{tpu_custom_call.1} parent=5 // pred_region
        %s197 = ssub.s32 %s14, 1
        // Predicated region
        $region37: #{tpu_custom_call.1} parent=35 // pred_check
          %p198 = pneg %p96
        $region38: #{tpu_custom_call.1} parent=35 // pred_check_branch
          %200 = sbr.rel (%p198) target = $region40
        $region39: #{tpu_custom_call.1} parent=35 // pred_region
          %201 = dma.done [#allocation4], 3072
        $region40: #{tpu_custom_call.1} parent=35 // pred_fallthru
          _
        %p202 = scmp.lt.s32.totalorder %s23, 1
        %s203 = scalar_select %p202, %s23, 1
        %p204 = scmp.lt.s32.totalorder %s24, 0
        %s205 = scalar_select %p204, %s24, 0
        %s206 = sadd.s32 %s205, %s203
        %s207 = smul.addr %s206, 8
        %s208 = scalar_lea.vmem %s0, %s207
        %p209 = pneg %p54
        %p210 = pneg %p51
        %p211 = pneg %p75
        %p212 = pneg %p72
        %p213 = pneg %p96
        %p214 = pneg %p93
        %p215 = pneg %p117
        %p216 = pneg %p114
        %p217 = pneg %p143
        %p218 = pneg %p140
        %s219 = sand.u32 %s130, 1
        %s220 = scalar_lea.sflag [#allocation5], %s219
        %s221 = sand.u32 %s130, 1
        %s222 = scalar_lea.vmem [#allocation6], %s221
        %p223 = scmp.lt.s32.totalorder %s23, 1
        %s224 = scalar_select %p223, %s23, 1
        %p225 = scmp.lt.s32.totalorder %s24, 0
        %s226 = scalar_select %p225, %s24, 0
        %s227 = sadd.s32 %s226, %s224
        %s228 = smul.addr %s227, 8
        %s229 = scalar_lea.vmem %s0, %s228
        %p231 = scmp.eq.s32.totalorder %s24, 0
        // Predicated region
        $region41: #{tpu_custom_call.1} parent=35 // pred_check
          %p232 = pneg %p231
        $region42: #{tpu_custom_call.1} parent=35 // pred_check_branch
          %234 = sbr.rel (%p232) target = $region44
        $region43: #{tpu_custom_call.1} parent=35 // pred_region
          %235 = vst [vmem:[#allocation2] sm:$0xff] 0.0
        $region44: #{tpu_custom_call.1} parent=35 // pred_fallthru
          _
        %v236 = vld [vmem:[%s229] sm:$0xff]
        %v237 = vld [vmem:[%s1] sm:$0x1]
        %239 = vset.pattern.permute.xlu0 0
        %240 = vperm.xlu0 %239, %v236
        %v241 = vpop.permute.xlu0 %240
        %v243 = vlaneseq
        %v244 = vshrl.u32 %v243, 7
        %v245 = vsub.s32 0, %v244
        %v246 = vrot.slane %v237, %v245
        %v247 = vmul.f32 %v241, %v246
        %v248 = vld [vmem:[%s1 + $0x1] sm:$0x1]
        %249 = vset.pattern.permute.xlu0 1
        %250 = vperm.xlu0 %249, %v236
        %v251 = vpop.permute.xlu0 %250
        %v253 = vlaneseq
        %v254 = vshrl.u32 %v253, 7
        %v255 = vsub.s32 0, %v254
        %v256 = vrot.slane %v248, %v255
        %v257 = vmul.f32 %v251, %v256
        %v258 = vadd.f32 %v247, %v257
        %v259 = vld [vmem:[%s1 + $0x2] sm:$0x1]
        %260 = vset.pattern.permute.xlu0 2
        %261 = vperm.xlu0 %260, %v236
        %v262 = vpop.permute.xlu0 %261
        %v264 = vlaneseq
        %v265 = vshrl.u32 %v264, 7
        %v266 = vsub.s32 0, %v265
        %v267 = vrot.slane %v259, %v266
        %v268 = vmul.f32 %v262, %v267
        %v269 = vadd.f32 %v258, %v268
        %v270 = vld [vmem:[%s3] sm:$0x1]
        %v271 = vlaneseq
        %v272 = vshrl.u32 %v271, 7
        %v273 = vsub.s32 0, %v272
        %v274 = vrot.slane %v270, %v273
        %v275 = vadd.f32 %v269, %v274
        %v276 = vmax.f32 %v275, 0.0
        %v277 = vpack.c.bf16 %v276, %v276
        %v278 = vld [vmem:[#allocation3] sm:$0xf]
        %v279 = vld [vmem:[#allocation3 + $0x4] sm:$0xf]
        %v280 = vld [vmem:[#allocation3 + $0x8] sm:$0xf]
        %v281 = vld [vmem:[#allocation3 + $0xc] sm:$0xf]
        %v282 = vld [vmem:[#allocation3 + $0x10] sm:$0xf]
        %v283 = vld [vmem:[#allocation3 + $0x14] sm:$0xf]
        %v284 = vld [vmem:[#allocation3 + $0x18] sm:$0xf]
        %v285 = vld [vmem:[#allocation3 + $0x1c] sm:$0xf]
        %v286 = vld [vmem:[#allocation3 + $0x20] sm:$0xf]
        %v287 = vld [vmem:[#allocation3 + $0x24] sm:$0xf]
        %v288 = vld [vmem:[#allocation3 + $0x28] sm:$0xf]
        %v289 = vld [vmem:[#allocation3 + $0x2c] sm:$0xf]
        %v290 = vld [vmem:[#allocation3 + $0x30] sm:$0xf]
        %v291 = vld [vmem:[#allocation3 + $0x34] sm:$0xf]
        %v292 = vld [vmem:[#allocation3 + $0x38] sm:$0xf]
        %v293 = vld [vmem:[#allocation3 + $0x3c] sm:$0xf]
        %v294 = vld [vmem:[%s3 + $0x1] sm:$0x1]
        %v295 = vlaneseq
        %v296 = vshrl.u32 %v295, 7
        %v297 = vsub.s32 0, %v296
        %v298 = vrot.slane %v294, %v297
        %v315 = vunpack.c.l.b16 %v278
        %v316 = vunpack.c.l.b16 %v279
        %v317 = vunpack.c.l.b16 %v280
        %v318 = vunpack.c.l.b16 %v281
        %v319 = vunpack.c.l.b16 %v282
        %v320 = vunpack.c.l.b16 %v283
        %v321 = vunpack.c.l.b16 %v284
        %v322 = vunpack.c.l.b16 %v285
        %v323 = vunpack.c.l.b16 %v286
        %v324 = vunpack.c.l.b16 %v287
        %v325 = vunpack.c.l.b16 %v288
        %v326 = vunpack.c.l.b16 %v289
        %v327 = vunpack.c.l.b16 %v290
        %v328 = vunpack.c.l.b16 %v291
        %v329 = vunpack.c.l.b16 %v292
        %v330 = vunpack.c.l.b16 %v293
        %v331 = vpack.c.b16 %v316, %v315
        %v332 = vpack.c.b16 %v318, %v317
        %v333 = vpack.c.b16 %v320, %v319
        %v334 = vpack.c.b16 %v322, %v321
        %v335 = vpack.c.b16 %v324, %v323
        %v336 = vpack.c.b16 %v326, %v325
        %v337 = vpack.c.b16 %v328, %v327
        %v338 = vpack.c.b16 %v330, %v329
        %347 = vmatprep.subr.bf16.mxu0 0
        %348 = vmatpush1.bf16.msra.mxu0 %v331
        %349 = vmatprep.subr.bf16.mxu0 0
        %350 = vmatpush1.bf16.msra.mxu0 %v332
        %351 = vmatprep.subr.bf16.mxu0 0
        %352 = vmatpush1.bf16.msra.mxu0 %v333
        %353 = vmatprep.subr.bf16.mxu0 0
        %354 = vmatpush1.bf16.msra.mxu0 %v334
        %355 = vmatprep.subr.bf16.mxu0 0
        %356 = vmatpush1.bf16.msra.mxu0 %v335
        %357 = vmatprep.subr.bf16.mxu0 0
        %358 = vmatpush1.bf16.msra.mxu0 %v336
        %359 = vmatprep.subr.bf16.mxu0 0
        %360 = vmatpush1.bf16.msra.mxu0 %v337
        %361 = vmatprep.subr.bf16.mxu0 0
        %362 = vmatpush1.bf16.msra.mxu0 %v338
        %363 = vmatprep.subr.bf16.mxu0 0
        %364 = vmatpush1.bf16.msra.mxu0 0
        %365 = vmatprep.subr.bf16.mxu0 0
        %366 = vmatpush1.bf16.msra.mxu0 0
        %367 = vmatprep.subr.bf16.mxu0 0
        %368 = vmatpush1.bf16.msra.mxu0 0
        %369 = vmatprep.subr.bf16.mxu0 0
        %370 = vmatpush1.bf16.msra.mxu0 0
        %371 = vmatprep.subr.bf16.mxu0 0
        %372 = vmatpush1.bf16.msra.mxu0 0
        %373 = vmatprep.subr.bf16.mxu0 0
        %374 = vmatpush1.bf16.msra.mxu0 0
        %375 = vmatprep.subr.bf16.mxu0 0
        %376 = vmatpush1.bf16.msra.mxu0 0
        %377 = vmatprep.subr.bf16.mxu0 0
        %378 = vmatpush1.bf16.msra.mxu0 0
        %379 = vmatprep.mubr.bf16.mxu0 0
        %380 = vmatmul.mubr.bf16.gmra.mrb[0].mxu0 %v277
        %v381 = vpop.f32.mrb[0].mxu0
        %v382 = vadd.f32 %v298, %v381
        %v383 = vpop.f32.mrb[0].mxu0
        %v384 = vpop.f32.mrb[0].mxu0
        %v385 = vpop.f32.mrb[0].mxu0
        %386 = vdwg.mxu0
        %v387 = vmax.f32 %v382, 0.0
        %v388 = vpack.c.bf16 %v387, %v387
        %s389 = scalar_lea.vmem [#allocation3], 64
        %v390 = vld [vmem:[%s389] sm:$0xf]
        %v391 = vld [vmem:[%s389 + $0x4] sm:$0xf]
        %v392 = vld [vmem:[%s389 + $0x8] sm:$0xf]
        %v393 = vld [vmem:[%s389 + $0xc] sm:$0xf]
        %v394 = vld [vmem:[%s389 + $0x10] sm:$0xf]
        %v395 = vld [vmem:[%s389 + $0x14] sm:$0xf]
        %v396 = vld [vmem:[%s389 + $0x18] sm:$0xf]
        %v397 = vld [vmem:[%s389 + $0x1c] sm:$0xf]
        %v398 = vld [vmem:[%s389 + $0x20] sm:$0xf]
        %v399 = vld [vmem:[%s389 + $0x24] sm:$0xf]
        %v400 = vld [vmem:[%s389 + $0x28] sm:$0xf]
        %v401 = vld [vmem:[%s389 + $0x2c] sm:$0xf]
        %v402 = vld [vmem:[%s389 + $0x30] sm:$0xf]
        %v403 = vld [vmem:[%s389 + $0x34] sm:$0xf]
        %v404 = vld [vmem:[%s389 + $0x38] sm:$0xf]
        %v405 = vld [vmem:[%s389 + $0x3c] sm:$0xf]
        %v406 = vld [vmem:[%s3 + $0x2] sm:$0x1]
        %v407 = vlaneseq
        %v408 = vshrl.u32 %v407, 7
        %v409 = vsub.s32 0, %v408
        %v410 = vrot.slane %v406, %v409
        %v427 = vunpack.c.l.b16 %v390
        %v428 = vunpack.c.l.b16 %v391
        %v429 = vunpack.c.l.b16 %v392
        %v430 = vunpack.c.l.b16 %v393
        %v431 = vunpack.c.l.b16 %v394
        %v432 = vunpack.c.l.b16 %v395
        %v433 = vunpack.c.l.b16 %v396
        %v434 = vunpack.c.l.b16 %v397
        %v435 = vunpack.c.l.b16 %v398
        %v436 = vunpack.c.l.b16 %v399
        %v437 = vunpack.c.l.b16 %v400
        %v438 = vunpack.c.l.b16 %v401
        %v439 = vunpack.c.l.b16 %v402
        %v440 = vunpack.c.l.b16 %v403
        %v441 = vunpack.c.l.b16 %v404
        %v442 = vunpack.c.l.b16 %v405
        %v443 = vpack.c.b16 %v428, %v427
        %v444 = vpack.c.b16 %v430, %v429
        %v445 = vpack.c.b16 %v432, %v431
        %v446 = vpack.c.b16 %v434, %v433
        %v447 = vpack.c.b16 %v436, %v435
        %v448 = vpack.c.b16 %v438, %v437
        %v449 = vpack.c.b16 %v440, %v439
        %v450 = vpack.c.b16 %v442, %v441
        %459 = vmatprep.subr.bf16.mxu0 0
        %460 = vmatpush1.bf16.msra.mxu0 %v443
        %461 = vmatprep.subr.bf16.mxu0 0
        %462 = vmatpush1.bf16.msra.mxu0 %v444
        %463 = vmatprep.subr.bf16.mxu0 0
        %464 = vmatpush1.bf16.msra.mxu0 %v445
        %465 = vmatprep.subr.bf16.mxu0 0
        %466 = vmatpush1.bf16.msra.mxu0 %v446
        %467 = vmatprep.subr.bf16.mxu0 0
        %468 = vmatpush1.bf16.msra.mxu0 %v447
        %469 = vmatprep.subr.bf16.mxu0 0
        %470 = vmatpush1.bf16.msra.mxu0 %v448
        %471 = vmatprep.subr.bf16.mxu0 0
        %472 = vmatpush1.bf16.msra.mxu0 %v449
        %473 = vmatprep.subr.bf16.mxu0 0
        %474 = vmatpush1.bf16.msra.mxu0 %v450
        %475 = vmatprep.subr.bf16.mxu0 0
        %476 = vmatpush1.bf16.msra.mxu0 0
        %477 = vmatprep.subr.bf16.mxu0 0
        %478 = vmatpush1.bf16.msra.mxu0 0
        %479 = vmatprep.subr.bf16.mxu0 0
        %480 = vmatpush1.bf16.msra.mxu0 0
        %481 = vmatprep.subr.bf16.mxu0 0
        %482 = vmatpush1.bf16.msra.mxu0 0
        %483 = vmatprep.subr.bf16.mxu0 0
        %484 = vmatpush1.bf16.msra.mxu0 0
        %485 = vmatprep.subr.bf16.mxu0 0
        %486 = vmatpush1.bf16.msra.mxu0 0
        %487 = vmatprep.subr.bf16.mxu0 0
        %488 = vmatpush1.bf16.msra.mxu0 0
        %489 = vmatprep.subr.bf16.mxu0 0
        %490 = vmatpush1.bf16.msra.mxu0 0
        %491 = vmatprep.mubr.bf16.mxu0 0
        %492 = vmatmul.mubr.bf16.gmra.mrb[0].mxu0 %v388
        %v493 = vpop.f32.mrb[0].mxu0
        %v494 = vadd.f32 %v410, %v493
        %v495 = vpop.f32.mrb[0].mxu0
        %v496 = vpop.f32.mrb[0].mxu0
        %v497 = vpop.f32.mrb[0].mxu0
        %498 = vdwg.mxu0
        %v499 = vmax.f32 %v494, 0.0
        %v500 = vpack.c.bf16 %v499, %v499
        %s501 = scalar_lea.vmem [#allocation3], 128
        %v502 = vld [vmem:[%s501] sm:$0xf]
        %v503 = vld [vmem:[%s501 + $0x4] sm:$0xf]
        %v504 = vld [vmem:[%s501 + $0x8] sm:$0xf]
        %v505 = vld [vmem:[%s501 + $0xc] sm:$0xf]
        %v506 = vld [vmem:[%s501 + $0x10] sm:$0xf]
        %v507 = vld [vmem:[%s501 + $0x14] sm:$0xf]
        %v508 = vld [vmem:[%s501 + $0x18] sm:$0xf]
        %v509 = vld [vmem:[%s501 + $0x1c] sm:$0xf]
        %v510 = vld [vmem:[%s501 + $0x20] sm:$0xf]
        %v511 = vld [vmem:[%s501 + $0x24] sm:$0xf]
        %v512 = vld [vmem:[%s501 + $0x28] sm:$0xf]
        %v513 = vld [vmem:[%s501 + $0x2c] sm:$0xf]
        %v514 = vld [vmem:[%s501 + $0x30] sm:$0xf]
        %v515 = vld [vmem:[%s501 + $0x34] sm:$0xf]
        %v516 = vld [vmem:[%s501 + $0x38] sm:$0xf]
        %v517 = vld [vmem:[%s501 + $0x3c] sm:$0xf]
        %v518 = vld [vmem:[%s3 + $0x3] sm:$0x1]
        %v519 = vlaneseq
        %v520 = vshrl.u32 %v519, 7
        %v521 = vsub.s32 0, %v520
        %v522 = vrot.slane %v518, %v521
        %v539 = vunpack.c.l.b16 %v502
        %v540 = vunpack.c.l.b16 %v503
        %v541 = vunpack.c.l.b16 %v504
        %v542 = vunpack.c.l.b16 %v505
        %v543 = vunpack.c.l.b16 %v506
        %v544 = vunpack.c.l.b16 %v507
        %v545 = vunpack.c.l.b16 %v508
        %v546 = vunpack.c.l.b16 %v509
        %v547 = vunpack.c.l.b16 %v510
        %v548 = vunpack.c.l.b16 %v511
        %v549 = vunpack.c.l.b16 %v512
        %v550 = vunpack.c.l.b16 %v513
        %v551 = vunpack.c.l.b16 %v514
        %v552 = vunpack.c.l.b16 %v515
        %v553 = vunpack.c.l.b16 %v516
        %v554 = vunpack.c.l.b16 %v517
        %v555 = vpack.c.b16 %v540, %v539
        %v556 = vpack.c.b16 %v542, %v541
        %v557 = vpack.c.b16 %v544, %v543
        %v558 = vpack.c.b16 %v546, %v545
        %v559 = vpack.c.b16 %v548, %v547
        %v560 = vpack.c.b16 %v550, %v549
        %v561 = vpack.c.b16 %v552, %v551
        %v562 = vpack.c.b16 %v554, %v553
        %571 = vmatprep.subr.bf16.mxu0 0
        %572 = vmatpush1.bf16.msra.mxu0 %v555
        %573 = vmatprep.subr.bf16.mxu0 0
        %574 = vmatpush1.bf16.msra.mxu0 %v556
        %575 = vmatprep.subr.bf16.mxu0 0
        %576 = vmatpush1.bf16.msra.mxu0 %v557
        %577 = vmatprep.subr.bf16.mxu0 0
        %578 = vmatpush1.bf16.msra.mxu0 %v558
        %579 = vmatprep.subr.bf16.mxu0 0
        %580 = vmatpush1.bf16.msra.mxu0 %v559
        %581 = vmatprep.subr.bf16.mxu0 0
        %582 = vmatpush1.bf16.msra.mxu0 %v560
        %583 = vmatprep.subr.bf16.mxu0 0
        %584 = vmatpush1.bf16.msra.mxu0 %v561
        %585 = vmatprep.subr.bf16.mxu0 0
        %586 = vmatpush1.bf16.msra.mxu0 %v562
        %587 = vmatprep.subr.bf16.mxu0 0
        %588 = vmatpush1.bf16.msra.mxu0 0
        %589 = vmatprep.subr.bf16.mxu0 0
        %590 = vmatpush1.bf16.msra.mxu0 0
        %591 = vmatprep.subr.bf16.mxu0 0
        %592 = vmatpush1.bf16.msra.mxu0 0
        %593 = vmatprep.subr.bf16.mxu0 0
        %594 = vmatpush1.bf16.msra.mxu0 0
        %595 = vmatprep.subr.bf16.mxu0 0
        %596 = vmatpush1.bf16.msra.mxu0 0
        %597 = vmatprep.subr.bf16.mxu0 0
        %598 = vmatpush1.bf16.msra.mxu0 0
        %599 = vmatprep.subr.bf16.mxu0 0
        %600 = vmatpush1.bf16.msra.mxu0 0
        %601 = vmatprep.subr.bf16.mxu0 0
        %602 = vmatpush1.bf16.msra.mxu0 0
        %603 = vmatprep.mubr.bf16.mxu0 0
        %604 = vmatmul.mubr.bf16.gmra.mrb[0].mxu0 %v500
        %v605 = vpop.f32.mrb[0].mxu0
        %v606 = vadd.f32 %v522, %v605
        %v607 = vpop.f32.mrb[0].mxu0
        %v608 = vpop.f32.mrb[0].mxu0
        %v609 = vpop.f32.mrb[0].mxu0
        %610 = vdwg.mxu0
        %v611 = vld [vmem:[#allocation2] sm:$0xff]
        %v612 = vadd.f32 %v606, 0.0
        %v613 = vadd.f32 %v611, %v612
        %614 = vst [vmem:[#allocation2] sm:$0xff] %v613
        // Predicated region
        $region45: #{tpu_custom_call.1} parent=35 // pred_check
          %p615 = pneg %p231
        $region46: #{tpu_custom_call.1} parent=35 // pred_check_branch
          %617 = sbr.rel (%p615) target = $region48
        $region47: #{tpu_custom_call.1} parent=35 // pred_region
          %v618 = vld [vmem:[#allocation2] sm:$0xff]
          %v619 = vrot.slane %v618, 4
          %v620 = vadd.f32 %v618, %v619
          %v621 = vrot.slane %v620, 2
          %v622 = vadd.f32 %v620, %v621
          %v623 = vrot.slane %v622, 1
          %v624 = vadd.f32 %v622, %v623
          %625 = vst [vmem:[%s222] sm:$0x1] %v624
        $region48: #{tpu_custom_call.1} parent=35 // pred_fallthru
          _
        %s626 = sand.u32 %s130, 1
        %s627 = scalar_lea.sflag [#allocation5], %s626
        %s628 = sand.u32 %s130, 1
        %s629 = scalar_lea.vmem [#allocation6], %s628
        // Predicated region
        $region49: #{tpu_custom_call.1} parent=35 // pred_check
          %p630 = pneg %p140
        $region50: #{tpu_custom_call.1} parent=35 // pred_check_branch
          %632 = sbr.rel (%p630) target = $region52
        $region51: #{tpu_custom_call.1} parent=35 // pred_region
          %s634 = ssub.s32 16, 16
          %635 = vsyncadd %s627, %s634
          %s636 = smul.addr %s23, 16
          %s637 = scalar_lea.hbm %s4, %s636
          %s639 = sshll.u32 %s629, 4
          %s640 = int_to_ptr.vmem [resolvable:$true] %s639
          %642 = dma.vmem_to_hbm [thread:$0]  %s640, 16, %s637, %s627
        $region52: #{tpu_custom_call.1} parent=35 // pred_fallthru
          _
      $region36: #{tpu_custom_call.1} parent=5 // pred_fallthru
        _
      %p643 = scmp.le.s32.totalorder 2, %s14
      // Predicated region
      $region53: #{tpu_custom_call.1} parent=5 // pred_check
        %p644 = pneg %p643
      $region54: #{tpu_custom_call.1} parent=5 // pred_check_branch
        %646 = sbr.rel (%p644) target = $region56
      $region55: #{tpu_custom_call.1} parent=5 // pred_region
        %s647 = ssub.s32 %s14, 2
        // Predicated region
        $region57: #{tpu_custom_call.1} parent=55 // pred_check
          %p648 = pneg %p146
        $region58: #{tpu_custom_call.1} parent=55 // pred_check_branch
          %650 = sbr.rel (%p648) target = $region60
        $region59: #{tpu_custom_call.1} parent=55 // pred_region
          %s651 = sand.u32 %s131, 1
          %s652 = scalar_lea.sflag [#allocation5], %s651
          %s653 = sand.u32 %s131, 1
          %s654 = scalar_lea.vmem [#allocation6], %s653
          %655 = dma.done %s652, 16
        $region60: #{tpu_custom_call.1} parent=55 // pred_fallthru
          _
      $region56: #{tpu_custom_call.1} parent=5 // pred_fallthru
        _
    $region6: #{tpu_custom_call.1} parent=1 // loop_footer
      %s18 = sadd.s32 1, %s14
    $region7: #{tpu_custom_call.1} parent=1 // loop_footer_branch
      %13 = sbr.rel target = $region3
    $region8: #{tpu_custom_call.1} parent=1 // loop_exit
      _
    %656 = vsyncpa [#allocation4], 1
    %s657 = scalar_lea.sflag [#allocation4], 1
    %658 = vsyncpa %s657, 1
    %659 = vsyncpa [#allocation5], 1
    %s660 = scalar_lea.sflag [#allocation5], 1
    %661 = vsyncpa %s660, 1

</llo_original>
